<compile_context>
chip_gen: v6e
topology: v6e:2x2x1
jax: 0.10.0
libtpu: 0.0.40
codegen_flags: <defaults>
</compile_context>

<pallas_src>
import functools
import math

import jax
import jax.numpy as jnp
from jax import lax
from jax.experimental import pallas as pl
from jax.experimental.pallas import tpu as pltpu

EPS_GEM = 1e-6      # GeM eps   (torch: x.clamp(min=eps))
EPS_NORM = 1e-12    # torch.nn.functional.normalize eps

# ---------------- model hyper-params (small, deterministic) -----------------
B, CIN, H, W = 2, 3, 16, 16         # input  (NCHW)
NUM_FEATURES = 32                   # backbone num_features
EMBED = 32                          # embedding_size (neck output)
NUM_IDS = 8                         # num_identities
NUM_SUB = 2                         # num_subcenters

MXU_DTYPE = jnp.bfloat16            # conv matmul operand dtype (f32 accumulate)
GEM_P_STATIC = 3.0                  # specialize GeM p (matches init p=3);
                                    # set to None to use the trainable SMEM p.


# ------------------------------ fused Pallas kernel --------------------------
def fused_kernel(gem_p_ref, patches_ref, convwT_ref, convb_ref, pool_ref,
                 neckw_ref, neckb_ref, arcw_ref, featT_ref, logitsT_ref,
                 *, p_const):
    """conv3x3+ReLU -> GeM -> fc neck -> sub-center ArcFace, all feature-major."""
    # ---- backbone stand-in: one im2col MXU matmul, lane-dense over R=B*H*W --
    # convwT_ref: (COUT, 27) bf16,  patches_ref: (27, R) bf16
    fmap = jnp.dot(convwT_ref[...], patches_ref[...],
                   preferred_element_type=jnp.float32)            # (COUT, R) f32
    fmap = jnp.maximum(fmap + convb_ref[...], 0.0)                # bias + ReLU

    # ---- GeM: mean(clamp(x, eps)^p) over spatial, then ^(1/p) ----
    xc = jnp.maximum(fmap, EPS_GEM)
    if p_const is not None:
        p = float(p_const)
        xp = xc * xc * xc if p == 3.0 else xc ** p                # VPU only
    else:
        p = gem_p_ref[0]                                          # trainable p
        xp = xc ** p                                              # exp/log (EUP)
    # spatial mean as an MXU matmul: pool_ref[r, b] = 1/HW inside batch b block
    pooledT = jnp.dot(xp, pool_ref[...],
                      preferred_element_type=jnp.float32)         # (COUT, B)
    pooledT = pooledT ** (1.0 / p)

    # ---- neck: Linear(num_features -> embedding_size), transposed ----
    featsT = jnp.dot(neckw_ref[...], pooledT,
                     preferred_element_type=jnp.float32) + neckb_ref[...]
    featT_ref[...] = featsT                                       # (E, B)

    # ---- ArcfaceHead: cos-sim against pre-normalized sub-center weights ----
    ss = jnp.sum(featsT * featsT, axis=0, keepdims=True)          # (1, B)
    fnT = featsT * lax.rsqrt(jnp.maximum(ss, EPS_NORM * EPS_NORM))
    scoresT = jnp.dot(arcw_ref[...], fnT,
                      preferred_element_type=jnp.float32)         # (S*OUT, B)
    n_out = logitsT_ref.shape[0]
    n_sub = scoresT.shape[0] // n_out
    bestT = scoresT[0:n_out, :]                                   # subcenter-major rows
    for s in range(1, n_sub):                                     # == max_pool1d(S)
        bestT = jnp.maximum(bestT, scoresT[s * n_out:(s + 1) * n_out, :])
    logitsT_ref[...] = jnp.clip(bestT, -1.0, 1.0)                 # (OUT, B)


# ------------------------------ Pallas wrapper -------------------------------
_VMEM = pl.BlockSpec(memory_space=pltpu.MemorySpace.VMEM)
_SMEM = pl.BlockSpec(memory_space=pltpu.MemorySpace.SMEM)


def fused_forward(gem_p, patchesT, convwT, convb, pool_mat, neckw, neckb, arcw,
                  *, p_const):
    k, r = patchesT.shape
    cout = convwT.shape[0]
    b = pool_mat.shape[1]
    e = neckw.shape[0]
    n_sub_out = arcw.shape[0]
    n_out = n_sub_out // NUM_SUB
    args = (gem_p, patchesT, convwT, convb, pool_mat, neckw, neckb, arcw)

    flops = (2 * cout * k * r           # conv im2col matmul
             + 6 * cout * r             # bias / relu / clamp / cube
             + 2 * cout * r * b         # GeM mean matmul
             + 2 * e * cout * b         # neck
             + 2 * n_sub_out * e * b)   # arcface scores
    trans = (2 * cout * r if p_const is None else 0) + 2 * cout * b + 2 * b
    bytes_acc = int(sum(a.size * a.dtype.itemsize for a in args)
                    + e * b * 4 + n_out * b * 4)

    return pl.pallas_call(
        functools.partial(fused_kernel, p_const=p_const),
        out_shape=(jax.ShapeDtypeStruct((e, b), jnp.float32),      # features^T
                   jax.ShapeDtypeStruct((n_out, b), jnp.float32)), # logits^T
        in_specs=[_SMEM, _VMEM, _VMEM, _VMEM, _VMEM, _VMEM, _VMEM, _VMEM],
        out_specs=(_VMEM, _VMEM),
        cost_estimate=pl.CostEstimate(flops=int(flops),
                                      transcendentals=int(trans),
                                      bytes_accessed=bytes_acc),
    )(*args)


# ------------------------------ glue (plain JAX) ------------------------------
def _prep_inputs(x, params):
    """Wrapper-side im2col + parameter re-layout (cheap; runs under jit)."""
    b = x.shape[0]
    hw = H * W
    # NCHW -> NHWC, SAME pad, im2col (column ordering: cin*9 + kh*3 + kw)
    xhwc = jnp.transpose(x, (0, 2, 3, 1))
    xpad = jnp.pad(xhwc, ((0, 0), (1, 1), (1, 1), (0, 0)))
    cols = [xpad[:, kh:kh + H, kw:kw + W, :] for kh in range(3) for kw in range(3)]
    stacked = jnp.stack(cols, axis=0)                      # (9, B, H, W, CIN)
    patchesT = stacked.transpose(4, 0, 1, 2, 3).reshape(CIN * 9, b * hw)
    patchesT = patchesT.astype(MXU_DTYPE)                  # (27, R) bf16, lane-dense

    # conv weight (COUT, CIN, 3, 3) -> (COUT, 27), column = cin*9 + kh*3 + kw
    convwT = params['conv_w'].reshape(NUM_FEATURES, CIN * 9).astype(MXU_DTYPE)
    convb = params['conv_b'].reshape(NUM_FEATURES, 1)

    # GeM spatial-mean matrix: (R, B), 1/HW inside each batch's block of rows
    pool_mat = jnp.repeat(jnp.eye(b, dtype=jnp.float32), hw, axis=0) * (1.0 / hw)

    # neck: torch Linear weight is already (E, C) -> use directly (transposed math)
    neckw = params['neck_w']                               # (E, C)
    neckb = params['neck_b'].reshape(EMBED, 1)

    # Pre-normalize ArcFace weights (constant per step) and lay them out
    # subcenter-major (row = s*OUT + id) so the kernel's max-pool is a static
    # sublane slice.
    aw = params['arc_w']                                   # (OUT*S, E), row = id*S+s
    awn = aw * lax.rsqrt(jnp.maximum(jnp.sum(aw * aw, -1, keepdims=True),
                                     EPS_NORM * EPS_NORM))
    arcw = awn.reshape(NUM_IDS, NUM_SUB, EMBED).transpose(1, 0, 2)
    arcw = arcw.reshape(NUM_SUB * NUM_IDS, EMBED)          # (S*OUT, E)
    return patchesT, convwT, convb, pool_mat, neckw, neckb, arcw


@jax.jit
def inner_net_forward(x, params):
    """x: (B, 3, H, W) float32 (NCHW, as in PyTorch). Returns (features, logits)."""
    patchesT, convwT, convb, pool_mat, neckw, neckb, arcw = _prep_inputs(x, params)
    featT, logitsT = fused_forward(params['gem_p'], patchesT, convwT, convb,
                                   pool_mat, neckw, neckb, arcw,
                                   p_const=GEM_P_STATIC)
    return featT.T, logitsT.T                              # (B, E), (B, OUT)


@jax.jit
def reference_forward(x, params):
    """Pure-JAX mirror of the kernel math (tolerance gate for the Pallas path)."""
    b = x.shape[0]
    xhwc = jnp.transpose(x, (0, 2, 3, 1))
    xpad = jnp.pad(xhwc, ((0, 0), (1, 1), (1, 1), (0, 0)))
    cols = [xpad[:, kh:kh + H, kw:kw + W, :] for kh in range(3) for kw in range(3)]
    stacked = jnp.stack(cols, axis=0)                                  # (9,B,H,W,CIN)
    patches = stacked.transpose(1, 2, 3, 4, 0).reshape(b * H * W, CIN * 9)
    wmat = params['conv_w'].reshape(NUM_FEATURES, CIN * 9).T           # (27, COUT)
    fmap = jnp.dot(patches.astype(MXU_DTYPE), wmat.astype(MXU_DTYPE),
                   preferred_element_type=jnp.float32) + params['conv_b'][None, :]
    fmap = jnp.maximum(fmap, 0.0)
    xc = jnp.maximum(fmap, EPS_GEM)
    if GEM_P_STATIC is not None:
        p = float(GEM_P_STATIC)
        xp = xc * xc * xc if p == 3.0 else xc ** p
    else:
        p = params['gem_p'][0]
        xp = xc ** p
    pooled = jnp.mean(xp.reshape(b, H * W, NUM_FEATURES), axis=1) ** (1.0 / p)
    feats = pooled @ params['neck_w'].T + params['neck_b'][None, :]
    fn = feats * lax.rsqrt(jnp.maximum(jnp.sum(feats * feats, -1, keepdims=True),
                                       EPS_NORM * EPS_NORM))
    aw = params['arc_w']
    awn = aw * lax.rsqrt(jnp.maximum(jnp.sum(aw * aw, -1, keepdims=True),
                                     EPS_NORM * EPS_NORM))
    scores = fn @ awn.T                                                # (B, OUT*S)
    best = jnp.max(scores.reshape(b, NUM_IDS, NUM_SUB), axis=-1)
    return feats, jnp.clip(best, -1.0, 1.0)


def init_params(key):
    k1, k2, k3, k4, k5 = jax.random.split(key, 5)
    conv_w = jax.random.normal(k1, (NUM_FEATURES, CIN, 3, 3), jnp.float32) * 0.1
    conv_b = jax.random.normal(k2, (NUM_FEATURES,), jnp.float32) * 0.01
    # torch Linear: weight (out, in)
    neck_w = jax.random.normal(k3, (EMBED, NUM_FEATURES), jnp.float32) / math.sqrt(NUM_FEATURES)
    neck_b = jax.random.normal(k4, (EMBED,), jnp.float32) * 0.01
    # ArcfaceHead weight (out_features*num_subcenters, in_features), xavier_uniform
    bound = math.sqrt(6.0 / (NUM_IDS * NUM_SUB + EMBED))
    arc_w = jax.random.uniform(k5, (NUM_IDS * NUM_SUB, EMBED), jnp.float32, -bound, bound)
    gem_p = jnp.array([3.0], jnp.float32)
    return dict(conv_w=conv_w, conv_b=conv_b, neck_w=neck_w, neck_b=neck_b,
                arc_w=arc_w, gem_p=gem_p)


if __name__ == "__main__":
    key = jax.random.PRNGKey(0)
    kx, kp = jax.random.split(key)
    # sample_input(): randint(255, size=(B, 3, H, W)).float()
    x = jax.random.randint(kx, (B, CIN, H, W), 0, 255).astype(jnp.float32)
    params = init_params(kp)

    features, logits = inner_net_forward(x, params)
    jax.block_until_ready((features, logits))

    # correctness gate vs a pure-JAX reference of the same math
    f_ref, l_ref = reference_forward(x, params)
    jax.block_until_ready((f_ref, l_ref))

    assert features.shape == (B, EMBED) and logits.shape == (B, NUM_IDS)
    assert bool(jnp.all(jnp.isfinite(features))) and bool(jnp.all(jnp.isfinite(logits)))
    assert bool(jnp.all(logits <= 1.0)) and bool(jnp.all(logits >= -1.0))
    assert bool(jnp.allclose(features, f_ref, rtol=2e-2, atol=5e-1))
    assert bool(jnp.allclose(logits, l_ref, rtol=2e-2, atol=2e-2))
    print("KERNEL_OK")
</pallas_src>

<mosaic_0001>
module attributes {stable_mosaic.version = 11 : i64} {
  func.func @fused_kernel(%arg0: memref<1xf32, #tpu.memory_space<smem>>, %arg1: memref<27x512xbf16, #tpu.memory_space<vmem>>, %arg2: memref<32x27xbf16, #tpu.memory_space<vmem>>, %arg3: memref<32x1xf32, #tpu.memory_space<vmem>>, %arg4: memref<512x2xf32, #tpu.memory_space<vmem>>, %arg5: memref<32x32xf32, #tpu.memory_space<vmem>>, %arg6: memref<32x1xf32, #tpu.memory_space<vmem>>, %arg7: memref<16x32xf32, #tpu.memory_space<vmem>>, %arg8: memref<32x2xf32, #tpu.memory_space<vmem>>, %arg9: memref<8x2xf32, #tpu.memory_space<vmem>>) attributes {dimension_semantics = [], scalar_prefetch = 0 : i64, scratch_operands = 0 : i64, tpu.core_type = #tpu.core_type<tc>} {
    %c0 = arith.constant 0 : index
    %c0_0 = arith.constant 0 : index
    %0 = vector.load %arg2[%c0, %c0_0] : memref<32x27xbf16, #tpu.memory_space<vmem>>, vector<32x27xbf16>
    %c0_1 = arith.constant 0 : index
    %c0_2 = arith.constant 0 : index
    %1 = vector.load %arg1[%c0_1, %c0_2] : memref<27x512xbf16, #tpu.memory_space<vmem>>, vector<27x512xbf16>
    %cst = arith.constant dense<0.000000e+00> : vector<32x512xf32>
    %2 = tpu.matmul %0, %1, %cst {dimension_numbers = #tpu.dot_dimension_numbers<[1], [0], [0], [1], [0, 0, 1, 1], [], []>} : vector<32x27xbf16>, vector<27x512xbf16>, vector<32x512xf32> -> vector<32x512xf32>
    %c0_3 = arith.constant 0 : index
    %c0_4 = arith.constant 0 : index
    %3 = vector.load %arg3[%c0_3, %c0_4] : memref<32x1xf32, #tpu.memory_space<vmem>>, vector<32x1xf32>
    %4 = vector.broadcast %3 : vector<32x1xf32> to vector<32x512xf32>
    %5 = arith.addf %2, %4 : vector<32x512xf32>
    %cst_5 = arith.constant 0.000000e+00 : f32
    %6 = vector.broadcast %cst_5 : f32 to vector<32x512xf32>
    %7 = arith.maximumf %5, %6 : vector<32x512xf32>
    %cst_6 = arith.constant 9.99999997E-7 : f32
    %8 = vector.broadcast %cst_6 : f32 to vector<32x512xf32>
    %9 = arith.maximumf %7, %8 : vector<32x512xf32>
    %10 = arith.mulf %9, %9 : vector<32x512xf32>
    %11 = arith.mulf %10, %9 : vector<32x512xf32>
    %c0_7 = arith.constant 0 : index
    %c0_8 = arith.constant 0 : index
    %12 = vector.load %arg4[%c0_7, %c0_8] : memref<512x2xf32, #tpu.memory_space<vmem>>, vector<512x2xf32>
    %cst_9 = arith.constant dense<0.000000e+00> : vector<32x2xf32>
    %13 = tpu.matmul %11, %12, %cst_9 {dimension_numbers = #tpu.dot_dimension_numbers<[1], [0], [0], [1], [0, 0, 1, 1], [], []>} : vector<32x512xf32>, vector<512x2xf32>, vector<32x2xf32> -> vector<32x2xf32>
    %cst_10 = arith.constant 0.333333343 : f32
    %14 = vector.broadcast %cst_10 : f32 to vector<32x2xf32>
    %15 = math.powf %13, %14 : vector<32x2xf32>
    %c0_11 = arith.constant 0 : index
    %c0_12 = arith.constant 0 : index
    %16 = vector.load %arg5[%c0_11, %c0_12] : memref<32x32xf32, #tpu.memory_space<vmem>>, vector<32x32xf32>
    %cst_13 = arith.constant dense<0.000000e+00> : vector<32x2xf32>
    %17 = tpu.matmul %16, %15, %cst_13 {dimension_numbers = #tpu.dot_dimension_numbers<[1], [0], [0], [1], [0, 0, 1, 1], [], []>} : vector<32x32xf32>, vector<32x2xf32>, vector<32x2xf32> -> vector<32x2xf32>
    %c0_14 = arith.constant 0 : index
    %c0_15 = arith.constant 0 : index
    %18 = vector.load %arg6[%c0_14, %c0_15] : memref<32x1xf32, #tpu.memory_space<vmem>>, vector<32x1xf32>
    %19 = vector.broadcast %18 : vector<32x1xf32> to vector<32x2xf32>
    %20 = arith.addf %17, %19 : vector<32x2xf32>
    %c0_16 = arith.constant 0 : index
    %c0_17 = arith.constant 0 : index
    %21 = vector.load %arg8[%c0_16, %c0_17] : memref<32x2xf32, #tpu.memory_space<vmem>>, vector<32x2xf32>
    tpu.vector_store %arg8[%c0_16, %c0_17], %20 {strides = array<i32>} : memref<32x2xf32, #tpu.memory_space<vmem>>, vector<32x2xf32>,
    %22 = arith.mulf %20, %20 : vector<32x2xf32>
    %cst_18 = arith.constant dense<0.000000e+00> : vector<2xf32>
    %23 = vector.multi_reduction <add>, %22, %cst_18 [0] : vector<32x2xf32> to vector<2xf32>
    %24 = vector.shape_cast %23 : vector<2xf32> to vector<1x2xf32>
    %cst_19 = arith.constant 1.000000e-24 : f32
    %25 = vector.broadcast %cst_19 : f32 to vector<1x2xf32>
    %26 = arith.maximumf %24, %25 : vector<1x2xf32>
    %27 = math.rsqrt %26 : vector<1x2xf32>
    %28 = vector.broadcast %27 : vector<1x2xf32> to vector<32x2xf32>
    %29 = arith.mulf %20, %28 : vector<32x2xf32>
    %c0_20 = arith.constant 0 : index
    %c0_21 = arith.constant 0 : index
    %30 = vector.load %arg7[%c0_20, %c0_21] : memref<16x32xf32, #tpu.memory_space<vmem>>, vector<16x32xf32>
    %cst_22 = arith.constant dense<0.000000e+00> : vector<16x2xf32>
    %31 = tpu.matmul %30, %29, %cst_22 {dimension_numbers = #tpu.dot_dimension_numbers<[1], [0], [0], [1], [0, 0, 1, 1], [], []>} : vector<16x32xf32>, vector<32x2xf32>, vector<16x2xf32> -> vector<16x2xf32>
    %32 = vector.extract_strided_slice %31 {offsets = [0, 0], sizes = [8, 2], strides = [1, 1]} : vector<16x2xf32> to vector<8x2xf32>
    %33 = vector.extract_strided_slice %31 {offsets = [8, 0], sizes = [8, 2], strides = [1, 1]} : vector<16x2xf32> to vector<8x2xf32>
    %34 = arith.maximumf %32, %33 : vector<8x2xf32>
    %cst_23 = arith.constant -1.000000e+00 : f32
    %cst_24 = arith.constant 1.000000e+00 : f32
    %35 = vector.broadcast %cst_23 : f32 to vector<8x2xf32>
    %36 = arith.maximumf %35, %34 : vector<8x2xf32>
    %37 = vector.broadcast %cst_24 : f32 to vector<8x2xf32>
    %38 = arith.minimumf %37, %36 : vector<8x2xf32>
    %c0_25 = arith.constant 0 : index
    %c0_26 = arith.constant 0 : index
    %39 = vector.load %arg9[%c0_25, %c0_26] : memref<8x2xf32, #tpu.memory_space<vmem>>, vector<8x2xf32>
    tpu.vector_store %arg9[%c0_25, %c0_26], %38 {strides = array<i32>} : memref<8x2xf32, #tpu.memory_space<vmem>>, vector<8x2xf32>,
    return
  }
}

</mosaic_0001>

<llo_original>
// kernel: inner_net_forward.1
$region0: #{inner_net_forward.1}
  #allocation0 [shape = 'u32[]', space=smem, size = 0x4, offset = 0x4, fixed_abs, tag = 'smem constant byte address 0x4 - core index']
  #allocation1 [shape = 'u32[144,128]{1,0:T(1,128)}', space=vmem, size = 0x12000, scoped, tag = 'internal scratch']
  #allocation2 [shape = 'f32[1]{0:T(128)S(6)}', space=smem, size = 0x200, scoped, tag = 'scoped memory for inner_net_forward.1']
  %s0 = inlined_call_operand.<no memory space> [shape: f32[1], index: 0, kind: input, shape index: {}]
  %s1 = inlined_call_operand.vmem [shape: bf16[27,512], index: 1, kind: input, shape index: {}]
  %s2 = inlined_call_operand.vmem [shape: bf16[32,27], index: 2, kind: input, shape index: {}]
  %s3 = inlined_call_operand.vmem [shape: f32[32,1], index: 3, kind: input, shape index: {}]
  %s4 = inlined_call_operand.vmem [shape: f32[512,2], index: 4, kind: input, shape index: {}]
  %s5 = inlined_call_operand.vmem [shape: f32[32,32], index: 5, kind: input, shape index: {}]
  %s6 = inlined_call_operand.vmem [shape: f32[32,1], index: 6, kind: input, shape index: {}]
  %s7 = inlined_call_operand.vmem [shape: f32[16,32], index: 7, kind: input, shape index: {}]
  %s8 = inlined_call_operand.vmem [shape: f32[32,2], index: 8, kind: output, shape index: {0}]
  %s9 = inlined_call_operand.vmem [shape: f32[8,2], index: 9, kind: output, shape index: {1}]
  %10 = xla_tuple %s8, %s9
  %s11 = sld [smem:[#allocation0]]
  $region50: #{inner_net_forward.1} parent=0
    _
  %s13 = ssub.s32 1, %s11
  %s14 = scalar_select 0, %s13, %s11
  %15 = sst [smem:[#allocation2]] %s0
  // Predicated region
  $region2: #{inner_net_forward.1} parent=0 // pred_check
    _
  $region3: #{inner_net_forward.1} parent=0 // pred_check_branch
    %17 = sbr.rel (0) target = $region5
  $region4: #{inner_net_forward.1} parent=0 // pred_region
    _
  $region5: #{inner_net_forward.1} parent=0 // pred_fallthru
    _
  // Predicated region
  $region6: #{inner_net_forward.1} parent=0 // pred_check
    _
  $region7: #{inner_net_forward.1} parent=0 // pred_check_branch
    %19 = sbr.rel (0) target = $region9
  $region8: #{inner_net_forward.1} parent=0 // pred_region
    _
  $region9: #{inner_net_forward.1} parent=0 // pred_fallthru
    _
  // Predicated region
  $region10: #{inner_net_forward.1} parent=0 // pred_check
    _
  $region11: #{inner_net_forward.1} parent=0 // pred_check_branch
    %21 = sbr.rel (0) target = $region13
  $region12: #{inner_net_forward.1} parent=0 // pred_region
    _
  $region13: #{inner_net_forward.1} parent=0 // pred_fallthru
    _
  // Predicated region
  $region14: #{inner_net_forward.1} parent=0 // pred_check
    _
  $region15: #{inner_net_forward.1} parent=0 // pred_check_branch
    %23 = sbr.rel (0) target = $region17
  $region16: #{inner_net_forward.1} parent=0 // pred_region
    _
  $region17: #{inner_net_forward.1} parent=0 // pred_fallthru
    _
  // Predicated region
  $region18: #{inner_net_forward.1} parent=0 // pred_check
    _
  $region19: #{inner_net_forward.1} parent=0 // pred_check_branch
    %25 = sbr.rel (0) target = $region21
  $region20: #{inner_net_forward.1} parent=0 // pred_region
    _
  $region21: #{inner_net_forward.1} parent=0 // pred_fallthru
    _
  // Predicated region
  $region22: #{inner_net_forward.1} parent=0 // pred_check
    _
  $region23: #{inner_net_forward.1} parent=0 // pred_check_branch
    %27 = sbr.rel (0) target = $region25
  $region24: #{inner_net_forward.1} parent=0 // pred_region
    _
  $region25: #{inner_net_forward.1} parent=0 // pred_fallthru
    _
  // Predicated region
  $region26: #{inner_net_forward.1} parent=0 // pred_check
    _
  $region27: #{inner_net_forward.1} parent=0 // pred_check_branch
    %29 = sbr.rel (0) target = $region29
  $region28: #{inner_net_forward.1} parent=0 // pred_region
    _
  $region29: #{inner_net_forward.1} parent=0 // pred_fallthru
    _
  // Predicated region
  $region30: #{inner_net_forward.1} parent=0 // pred_check
    _
  $region31: #{inner_net_forward.1} parent=0 // pred_check_branch
    %31 = sbr.rel (0) target = $region33
  $region32: #{inner_net_forward.1} parent=0 // pred_region
    _
  $region33: #{inner_net_forward.1} parent=0 // pred_fallthru
    _
  %v33 = vld [vmem:[%s2] sm:$0xf]
  %v34 = vld [vmem:[%s2 + $0x4] sm:$0xf]
  %v35 = vld [vmem:[%s2 + $0x8] sm:$0xf]
  %v36 = vld [vmem:[%s2 + $0xc] sm:$0xf]
  %v37 = vld [vmem:[%s1] sm:$0xff]
  %v38 = vld [vmem:[%s1 + $0x8] sm:$0xff]
  %v39 = vld [vmem:[%s1 + $0x10] sm:$0xff]
  %v40 = vld [vmem:[%s1 + $0x18] sm:$0xff]
  %v41 = vld [vmem:[%s1 + $0x20] sm:$0xff]
  %v42 = vld [vmem:[%s1 + $0x28] sm:$0xff]
  %v43 = vld [vmem:[%s1 + $0x30] sm:$0x33]
  %v44 = vld [vmem:[%s1 + $0x38] sm:$0x33]
  %v45 = vld [vmem:[%s3] sm:$0xff]
  %v46 = vld [vmem:[%s3 + $0x8] sm:$0xff]
  %v47 = vld [vmem:[%s3 + $0x10] sm:$0xff]
  %v48 = vld [vmem:[%s3 + $0x18] sm:$0xff]
  %50 = vset.pattern.permute.xlu0 0
  %51 = vperm.xlu0 %50, %v45
  %v52 = vpop.permute.xlu0 %51
  %55 = vset.pattern.permute.xlu0 0
  %56 = vperm.xlu0 %55, %v46
  %v57 = vpop.permute.xlu0 %56
  %60 = vset.pattern.permute.xlu0 0
  %61 = vperm.xlu0 %60, %v47
  %v62 = vpop.permute.xlu0 %61
  %65 = vset.pattern.permute.xlu0 0
  %66 = vperm.xlu0 %65, %v48
  %v67 = vpop.permute.xlu0 %66
  %v73 = vunpack.c.l.b16 %v33
  %v74 = vunpack.c.l.b16 %v34
  %v75 = vunpack.c.l.b16 %v35
  %v76 = vunpack.c.l.b16 %v36
  %v77 = vpack.c.b16 %v74, %v73
  %v78 = vpack.c.b16 %v76, %v75
  %v87 = vunpack.c.l.b16 %v37
  %v88 = vunpack.c.h.b16 %v37
  %v89 = vunpack.c.l.b16 %v38
  %v90 = vunpack.c.h.b16 %v38
  %v91 = vunpack.c.l.b16 %v39
  %v92 = vunpack.c.h.b16 %v39
  %v93 = vunpack.c.l.b16 %v40
  %v94 = vunpack.c.h.b16 %v40
  %v95 = vunpack.c.l.b16 %v41
  %v96 = vunpack.c.h.b16 %v41
  %v97 = vunpack.c.l.b16 %v42
  %v98 = vunpack.c.h.b16 %v42
  %v99 = vunpack.c.l.b16 %v43
  %v100 = vunpack.c.h.b16 %v43
  %v101 = vunpack.c.l.b16 %v44
  %v102 = vunpack.c.h.b16 %v44
  %v103 = vpack.c.b16 %v91, %v87
  %v104 = vpack.c.b16 %v92, %v88
  %v105 = vpack.c.b16 %v93, %v89
  %v106 = vpack.c.b16 %v94, %v90
  %v107 = vpack.c.b16 %v99, %v95
  %v108 = vpack.c.b16 %v100, %v96
  %v109 = vpack.c.b16 %v101, %v97
  %v110 = vpack.c.b16 %v102, %v98
  %vm115 = vcmask 220160
  %v117 = vsel %vm115, %v77, 0
  %v120 = vsel %vm115, %v78, 0
  %vm122 = vcmask 1044480
  %vm123 = vcmask 1045504
  %v124 = vsel %vm122, 4294967295, 65535
  %v125 = vsel %vm123, %v124, 0
  %v127 = vand.u32 %v107, %v125
  %v130 = vand.u32 %v108, %v125
  %v133 = vand.u32 %v109, %v125
  %v136 = vand.u32 %v110, %v125
  %138 = vmatprep.subr.bf16.mxu0 0
  %139 = vmatpush1.bf16.msra.mxu0 0
  %140 = vmatprep.subr.bf16.mxu0 0
  %141 = vmatpush1.bf16.msra.mxu0 0
  %142 = vmatprep.subr.bf16.mxu0 0
  %143 = vmatpush1.bf16.msra.mxu0 0
  %144 = vmatprep.subr.bf16.mxu0 0
  %145 = vmatpush1.bf16.msra.mxu0 0
  %146 = vmatprep.subr.bf16.mxu0 0
  %147 = vmatpush1.bf16.msra.mxu0 0
  %148 = vmatprep.subr.bf16.mxu0 0
  %149 = vmatpush1.bf16.msra.mxu0 0
  %150 = vmatprep.subr.bf16.mxu0 %v130
  %151 = vmatpush1.bf16.msra.mxu0 %v127
  %152 = vmatprep.subr.bf16.mxu0 %v104
  %153 = vmatpush1.bf16.msra.mxu0 %v103
  %154 = vmatprep.subr.bf16.mxu0 0
  %155 = vmatpush2.bf16.msra.mxu0 0
  %156 = vmatprep.subr.bf16.mxu0 0
  %157 = vmatpush2.bf16.msra.mxu0 0
  %158 = vmatprep.subr.bf16.mxu0 0
  %159 = vmatpush2.bf16.msra.mxu0 0
  %160 = vmatprep.subr.bf16.mxu0 0
  %161 = vmatpush2.bf16.msra.mxu0 0
  %162 = vmatprep.subr.bf16.mxu0 0
  %163 = vmatpush2.bf16.msra.mxu0 0
  %164 = vmatprep.subr.bf16.mxu0 0
  %165 = vmatpush2.bf16.msra.mxu0 0
  %166 = vmatprep.subr.bf16.mxu0 0
  %167 = vmatpush2.bf16.msra.mxu0 0
  %168 = vmatprep.subr.bf16.mxu0 0
  %169 = vmatpush2.bf16.msra.mxu0 0
  %170 = vmatprep.mubr.bf16.mxu0 0
  %171 = vmatmul.mubr.bf16.gmra.mxu0 %v117
  %v172 = vpop.f32.mrf.mxu0
  %v173 = vadd.f32 %v52, %v172
  %v174 = vpop.f32.mrf.mxu0
  %v175 = vadd.f32 %v52, %v174
  %v176 = vpop.f32.mrf.mxu0
  %v177 = vadd.f32 %v57, %v176
  %v178 = vpop.f32.mrf.mxu0
  %v179 = vadd.f32 %v57, %v178
  %180 = vmatprep.mubr.bf16.mxu0 0
  %181 = vmatmul.mubr.bf16.gmra.mxu0 %v120
  %v182 = vpop.f32.mrf.mxu0
  %v183 = vadd.f32 %v62, %v182
  %v184 = vpop.f32.mrf.mxu0
  %v185 = vadd.f32 %v62, %v184
  %v186 = vpop.f32.mrf.mxu0
  %v187 = vadd.f32 %v67, %v186
  %v188 = vpop.f32.mrf.mxu0
  %v189 = vadd.f32 %v67, %v188
  %190 = vdwg.mxu0
  %191 = vmatprep.subr.bf16.mxu0 0
  %192 = vmatpush1.bf16.msra.mxu0 0
  %193 = vmatprep.subr.bf16.mxu0 0
  %194 = vmatpush1.bf16.msra.mxu0 0
  %195 = vmatprep.subr.bf16.mxu0 0
  %196 = vmatpush1.bf16.msra.mxu0 0
  %197 = vmatprep.subr.bf16.mxu0 0
  %198 = vmatpush1.bf16.msra.mxu0 0
  %199 = vmatprep.subr.bf16.mxu0 0
  %200 = vmatpush1.bf16.msra.mxu0 0
  %201 = vmatprep.subr.bf16.mxu0 0
  %202 = vmatpush1.bf16.msra.mxu0 0
  %203 = vmatprep.subr.bf16.mxu0 %v136
  %204 = vmatpush1.bf16.msra.mxu0 %v133
  %205 = vmatprep.subr.bf16.mxu0 %v106
  %206 = vmatpush1.bf16.msra.mxu0 %v105
  %207 = vmatprep.subr.bf16.mxu0 0
  %208 = vmatpush2.bf16.msra.mxu0 0
  %209 = vmatprep.subr.bf16.mxu0 0
  %210 = vmatpush2.bf16.msra.mxu0 0
  %211 = vmatprep.subr.bf16.mxu0 0
  %212 = vmatpush2.bf16.msra.mxu0 0
  %213 = vmatprep.subr.bf16.mxu0 0
  %214 = vmatpush2.bf16.msra.mxu0 0
  %215 = vmatprep.subr.bf16.mxu0 0
  %216 = vmatpush2.bf16.msra.mxu0 0
  %217 = vmatprep.subr.bf16.mxu0 0
  %218 = vmatpush2.bf16.msra.mxu0 0
  %219 = vmatprep.subr.bf16.mxu0 0
  %220 = vmatpush2.bf16.msra.mxu0 0
  %221 = vmatprep.subr.bf16.mxu0 0
  %222 = vmatpush2.bf16.msra.mxu0 0
  %223 = vmatprep.mubr.bf16.mxu0 0
  %224 = vmatmul.mubr.bf16.gmra.mxu0 %v117
  %v225 = vpop.f32.mrf.mxu0
  %v226 = vadd.f32 %v52, %v225
  %v227 = vpop.f32.mrf.mxu0
  %v228 = vadd.f32 %v52, %v227
  %v229 = vpop.f32.mrf.mxu0
  %v230 = vadd.f32 %v57, %v229
  %v231 = vpop.f32.mrf.mxu0
  %v232 = vadd.f32 %v57, %v231
  %233 = vmatprep.mubr.bf16.mxu0 0
  %234 = vmatmul.mubr.bf16.gmra.mxu0 %v120
  %v235 = vpop.f32.mrf.mxu0
  %v236 = vadd.f32 %v62, %v235
  %v237 = vpop.f32.mrf.mxu0
  %v238 = vadd.f32 %v62, %v237
  %v239 = vpop.f32.mrf.mxu0
  %v240 = vadd.f32 %v67, %v239
  %v241 = vpop.f32.mrf.mxu0
  %v242 = vadd.f32 %v67, %v241
  %243 = vdwg.mxu0
  %v244 = vmax.f32 %v173, 0.0
  %v245 = vmax.f32 %v175, 0.0
  %v246 = vmax.f32 %v226, 0.0
  %v247 = vmax.f32 %v228, 0.0
  %v248 = vmax.f32 %v177, 0.0
  %v249 = vmax.f32 %v179, 0.0
  %v250 = vmax.f32 %v230, 0.0
  %v251 = vmax.f32 %v232, 0.0
  %v252 = vmax.f32 %v183, 0.0
  %v253 = vmax.f32 %v185, 0.0
  %v254 = vmax.f32 %v236, 0.0
  %v255 = vmax.f32 %v238, 0.0
  %v256 = vmax.f32 %v187, 0.0
  %v257 = vmax.f32 %v189, 0.0
  %v258 = vmax.f32 %v240, 0.0
  %v259 = vmax.f32 %v242, 0.0
  %v260 = vmax.f32 %v244, 1e-06
  %v261 = vmax.f32 %v245, 1e-06
  %v262 = vmax.f32 %v246, 1e-06
  %v263 = vmax.f32 %v247, 1e-06
  %v264 = vmax.f32 %v248, 1e-06
  %v265 = vmax.f32 %v249, 1e-06
  %v266 = vmax.f32 %v250, 1e-06
  %v267 = vmax.f32 %v251, 1e-06
  %v268 = vmax.f32 %v252, 1e-06
  %v269 = vmax.f32 %v253, 1e-06
  %v270 = vmax.f32 %v254, 1e-06
  %v271 = vmax.f32 %v255, 1e-06
  %v272 = vmax.f32 %v256, 1e-06
  %v273 = vmax.f32 %v257, 1e-06
  %v274 = vmax.f32 %v258, 1e-06
  %v275 = vmax.f32 %v259, 1e-06
  %v276 = vmul.f32 %v260, %v260
  %v277 = vmul.f32 %v261, %v261
  %v278 = vmul.f32 %v262, %v262
  %v279 = vmul.f32 %v263, %v263
  %v280 = vmul.f32 %v264, %v264
  %v281 = vmul.f32 %v265, %v265
  %v282 = vmul.f32 %v266, %v266
  %v283 = vmul.f32 %v267, %v267
  %v284 = vmul.f32 %v268, %v268
  %v285 = vmul.f32 %v269, %v269
  %v286 = vmul.f32 %v270, %v270
  %v287 = vmul.f32 %v271, %v271
  %v288 = vmul.f32 %v272, %v272
  %v289 = vmul.f32 %v273, %v273
  %v290 = vmul.f32 %v274, %v274
  %v291 = vmul.f32 %v275, %v275
  %v292 = vmul.f32 %v276, %v260
  %v293 = vmul.f32 %v277, %v261
  %v294 = vmul.f32 %v278, %v262
  %v295 = vmul.f32 %v279, %v263
  %v296 = vmul.f32 %v280, %v264
  %v297 = vmul.f32 %v281, %v265
  %v298 = vmul.f32 %v282, %v266
  %v299 = vmul.f32 %v283, %v267
  %v300 = vmul.f32 %v284, %v268
  %v301 = vmul.f32 %v285, %v269
  %v302 = vmul.f32 %v286, %v270
  %v303 = vmul.f32 %v287, %v271
  %v304 = vmul.f32 %v288, %v272
  %v305 = vmul.f32 %v289, %v273
  %v306 = vmul.f32 %v290, %v274
  %v307 = vmul.f32 %v291, %v275
  %v308 = vld [vmem:[%s4] sm:$0xff]
  %v309 = vld [vmem:[%s4 + $0x8] sm:$0xff]
  %v310 = vld [vmem:[%s4 + $0x10] sm:$0xff]
  %v311 = vld [vmem:[%s4 + $0x18] sm:$0xff]
  %v312 = vld [vmem:[%s4 + $0x20] sm:$0xff]
  %v313 = vld [vmem:[%s4 + $0x28] sm:$0xff]
  %v314 = vld [vmem:[%s4 + $0x30] sm:$0xff]
  %v315 = vld [vmem:[%s4 + $0x38] sm:$0xff]
  %v316 = vld [vmem:[%s4 + $0x40] sm:$0xff]
  %v317 = vld [vmem:[%s4 + $0x48] sm:$0xff]
  %v318 = vld [vmem:[%s4 + $0x50] sm:$0xff]
  %v319 = vld [vmem:[%s4 + $0x58] sm:$0xff]
  %v320 = vld [vmem:[%s4 + $0x60] sm:$0xff]
  %v321 = vld [vmem:[%s4 + $0x68] sm:$0xff]
  %v322 = vld [vmem:[%s4 + $0x70] sm:$0xff]
  %v323 = vld [vmem:[%s4 + $0x78] sm:$0xff]
  %v324 = vld [vmem:[%s4 + $0x80] sm:$0xff]
  %v325 = vld [vmem:[%s4 + $0x88] sm:$0xff]
  %v326 = vld [vmem:[%s4 + $0x90] sm:$0xff]
  %v327 = vld [vmem:[%s4 + $0x98] sm:$0xff]
  %v328 = vld [vmem:[%s4 + $0xa0] sm:$0xff]
  %v329 = vld [vmem:[%s4 + $0xa8] sm:$0xff]
  %v330 = vld [vmem:[%s4 + $0xb0] sm:$0xff]
  %v331 = vld [vmem:[%s4 + $0xb8] sm:$0xff]
  %v332 = vld [vmem:[%s4 + $0xc0] sm:$0xff]
  %v333 = vld [vmem:[%s4 + $0xc8] sm:$0xff]
  %v334 = vld [vmem:[%s4 + $0xd0] sm:$0xff]
  %v335 = vld [vmem:[%s4 + $0xd8] sm:$0xff]
  %v336 = vld [vmem:[%s4 + $0xe0] sm:$0xff]
  %v337 = vld [vmem:[%s4 + $0xe8] sm:$0xff]
  %v338 = vld [vmem:[%s4 + $0xf0] sm:$0xff]
  %v339 = vld [vmem:[%s4 + $0xf8] sm:$0xff]
  %v340 = vld [vmem:[%s4 + $0x100] sm:$0xff]
  %v341 = vld [vmem:[%s4 + $0x108] sm:$0xff]
  %v342 = vld [vmem:[%s4 + $0x110] sm:$0xff]
  %v343 = vld [vmem:[%s4 + $0x118] sm:$0xff]
  %v344 = vld [vmem:[%s4 + $0x120] sm:$0xff]
  %v345 = vld [vmem:[%s4 + $0x128] sm:$0xff]
  %v346 = vld [vmem:[%s4 + $0x130] sm:$0xff]
  %v347 = vld [vmem:[%s4 + $0x138] sm:$0xff]
  %v348 = vld [vmem:[%s4 + $0x140] sm:$0xff]
  %v349 = vld [vmem:[%s4 + $0x148] sm:$0xff]
  %v350 = vld [vmem:[%s4 + $0x150] sm:$0xff]
  %v351 = vld [vmem:[%s4 + $0x158] sm:$0xff]
  %v352 = vld [vmem:[%s4 + $0x160] sm:$0xff]
  %v353 = vld [vmem:[%s4 + $0x168] sm:$0xff]
  %v354 = vld [vmem:[%s4 + $0x170] sm:$0xff]
  %v355 = vld [vmem:[%s4 + $0x178] sm:$0xff]
  %v356 = vld [vmem:[%s4 + $0x180] sm:$0xff]
  %v357 = vld [vmem:[%s4 + $0x188] sm:$0xff]
  %v358 = vld [vmem:[%s4 + $0x190] sm:$0xff]
  %v359 = vld [vmem:[%s4 + $0x198] sm:$0xff]
  %v360 = vld [vmem:[%s4 + $0x1a0] sm:$0xff]
  %v361 = vld [vmem:[%s4 + $0x1a8] sm:$0xff]
  %v362 = vld [vmem:[%s4 + $0x1b0] sm:$0xff]
  %v363 = vld [vmem:[%s4 + $0x1b8] sm:$0xff]
  %v364 = vld [vmem:[%s4 + $0x1c0] sm:$0xff]
  %v365 = vld [vmem:[%s4 + $0x1c8] sm:$0xff]
  %v366 = vld [vmem:[%s4 + $0x1d0] sm:$0xff]
  %v367 = vld [vmem:[%s4 + $0x1d8] sm:$0xff]
  %v368 = vld [vmem:[%s4 + $0x1e0] sm:$0xff]
  %v369 = vld [vmem:[%s4 + $0x1e8] sm:$0xff]
  %v370 = vld [vmem:[%s4 + $0x1f0] sm:$0xff]
  %v371 = vld [vmem:[%s4 + $0x1f8] sm:$0xff]
  %372 = vmatprep.subr.mxu0 0.0
  %373 = vmatpush1.msra.mxu0 %v323
  %374 = vmatprep.subr.mxu0 0.0
  %375 = vmatpush1.msra.mxu0 %v322
  %376 = vmatprep.subr.mxu0 0.0
  %377 = vmatpush1.msra.mxu0 %v321
  %378 = vmatprep.subr.mxu0 0.0
  %379 = vmatpush1.msra.mxu0 %v320
  %380 = vmatprep.subr.mxu0 0.0
  %381 = vmatpush1.msra.mxu0 %v319
  %382 = vmatprep.subr.mxu0 0.0
  %383 = vmatpush1.msra.mxu0 %v318
  %384 = vmatprep.subr.mxu0 0.0
  %385 = vmatpush1.msra.mxu0 %v317
  %386 = vmatprep.subr.mxu0 0.0
  %387 = vmatpush1.msra.mxu0 %v316
  %388 = vmatprep.subr.mxu0 0.0
  %389 = vmatpush1.msra.mxu0 %v315
  %390 = vmatprep.subr.mxu0 0.0
  %391 = vmatpush1.msra.mxu0 %v314
  %392 = vmatprep.subr.mxu0 0.0
  %393 = vmatpush1.msra.mxu0 %v313
  %394 = vmatprep.subr.mxu0 0.0
  %395 = vmatpush1.msra.mxu0 %v312
  %396 = vmatprep.subr.mxu0 0.0
  %397 = vmatpush1.msra.mxu0 %v311
  %398 = vmatprep.subr.mxu0 0.0
  %399 = vmatpush1.msra.mxu0 %v310
  %400 = vmatprep.subr.mxu0 0.0
  %401 = vmatpush1.msra.mxu0 %v309
  %402 = vmatprep.subr.mxu0 0.0
  %403 = vmatpush1.msra.mxu0 %v308
  %404 = vmatprep.subr.mxu0 0.0
  %405 = vmatpush2.msra.mxu0 %v339
  %406 = vmatprep.subr.mxu0 0.0
  %407 = vmatpush2.msra.mxu0 %v338
  %408 = vmatprep.subr.mxu0 0.0
  %409 = vmatpush2.msra.mxu0 %v337
  %410 = vmatprep.subr.mxu0 0.0
  %411 = vmatpush2.msra.mxu0 %v336
  %412 = vmatprep.subr.mxu0 0.0
  %413 = vmatpush2.msra.mxu0 %v335
  %414 = vmatprep.subr.mxu0 0.0
  %415 = vmatpush2.msra.mxu0 %v334
  %416 = vmatprep.subr.mxu0 0.0
  %417 = vmatpush2.msra.mxu0 %v333
  %418 = vmatprep.subr.mxu0 0.0
  %419 = vmatpush2.msra.mxu0 %v332
  %420 = vmatprep.subr.mxu0 0.0
  %421 = vmatpush2.msra.mxu0 %v331
  %422 = vmatprep.subr.mxu0 0.0
  %423 = vmatpush2.msra.mxu0 %v330
  %424 = vmatprep.subr.mxu0 0.0
  %425 = vmatpush2.msra.mxu0 %v329
  %426 = vmatprep.subr.mxu0 0.0
  %427 = vmatpush2.msra.mxu0 %v328
  %428 = vmatprep.subr.mxu0 0.0
  %429 = vmatpush2.msra.mxu0 %v327
  %430 = vmatprep.subr.mxu0 0.0
  %431 = vmatpush2.msra.mxu0 %v326
  %432 = vmatprep.subr.mxu0 0.0
  %433 = vmatpush2.msra.mxu0 %v325
  %434 = vmatprep.subr.mxu0 0.0
  %435 = vmatpush2.msra.mxu0 %v324
  %436 = vmatprep.mubr.f32.mxu0 %v293
  %437 = vmatmul.mubr.f32.gmra.mxu0 %v292
  %v438 = vpop.f32.mrf.mxu0
  %v439 = vadd.f32 0.0, %v438
  %v440 = vpop.f32.mrf.mxu0
  %441 = vmatprep.mubr.f32.mxu0 %v297
  %442 = vmatmul.mubr.f32.gmra.mxu0 %v296
  %v443 = vpop.f32.mrf.mxu0
  %v444 = vadd.f32 0.0, %v443
  %v445 = vpop.f32.mrf.mxu0
  %446 = vmatprep.mubr.f32.mxu0 %v301
  %447 = vmatmul.mubr.f32.gmra.mxu0 %v300
  %v448 = vpop.f32.mrf.mxu0
  %v449 = vadd.f32 0.0, %v448
  %v450 = vpop.f32.mrf.mxu0
  %451 = vmatprep.mubr.f32.mxu0 %v305
  %452 = vmatmul.mubr.f32.gmra.mxu0 %v304
  %v453 = vpop.f32.mrf.mxu0
  %v454 = vadd.f32 0.0, %v453
  %v455 = vpop.f32.mrf.mxu0
  %456 = vdwg.mxu0
  %457 = vmatprep.subr.mxu0 0.0
  %458 = vmatpush1.msra.mxu0 %v355
  %459 = vmatprep.subr.mxu0 0.0
  %460 = vmatpush1.msra.mxu0 %v354
  %461 = vmatprep.subr.mxu0 0.0
  %462 = vmatpush1.msra.mxu0 %v353
  %463 = vmatprep.subr.mxu0 0.0
  %464 = vmatpush1.msra.mxu0 %v352
  %465 = vmatprep.subr.mxu0 0.0
  %466 = vmatpush1.msra.mxu0 %v351
  %467 = vmatprep.subr.mxu0 0.0
  %468 = vmatpush1.msra.mxu0 %v350
  %469 = vmatprep.subr.mxu0 0.0
  %470 = vmatpush1.msra.mxu0 %v349
  %471 = vmatprep.subr.mxu0 0.0
  %472 = vmatpush1.msra.mxu0 %v348
  %473 = vmatprep.subr.mxu0 0.0
  %474 = vmatpush1.msra.mxu0 %v347
  %475 = vmatprep.subr.mxu0 0.0
  %476 = vmatpush1.msra.mxu0 %v346
  %477 = vmatprep.subr.mxu0 0.0
  %478 = vmatpush1.msra.mxu0 %v345
  %479 = vmatprep.subr.mxu0 0.0
  %480 = vmatpush1.msra.mxu0 %v344
  %481 = vmatprep.subr.mxu0 0.0
  %482 = vmatpush1.msra.mxu0 %v343
  %483 = vmatprep.subr.mxu0 0.0
  %484 = vmatpush1.msra.mxu0 %v342
  %485 = vmatprep.subr.mxu0 0.0
  %486 = vmatpush1.msra.mxu0 %v341
  %487 = vmatprep.subr.mxu0 0.0
  %488 = vmatpush1.msra.mxu0 %v340
  %489 = vmatprep.subr.mxu0 0.0
  %490 = vmatpush2.msra.mxu0 %v371
  %491 = vmatprep.subr.mxu0 0.0
  %492 = vmatpush2.msra.mxu0 %v370
  %493 = vmatprep.subr.mxu0 0.0
  %494 = vmatpush2.msra.mxu0 %v369
  %495 = vmatprep.subr.mxu0 0.0
  %496 = vmatpush2.msra.mxu0 %v368
  %497 = vmatprep.subr.mxu0 0.0
  %498 = vmatpush2.msra.mxu0 %v367
  %499 = vmatprep.subr.mxu0 0.0
  %500 = vmatpush2.msra.mxu0 %v366
  %501 = vmatprep.subr.mxu0 0.0
  %502 = vmatpush2.msra.mxu0 %v365
  %503 = vmatprep.subr.mxu0 0.0
  %504 = vmatpush2.msra.mxu0 %v364
  %505 = vmatprep.subr.mxu0 0.0
  %506 = vmatpush2.msra.mxu0 %v363
  %507 = vmatprep.subr.mxu0 0.0
  %508 = vmatpush2.msra.mxu0 %v362
  %509 = vmatprep.subr.mxu0 0.0
  %510 = vmatpush2.msra.mxu0 %v361
  %511 = vmatprep.subr.mxu0 0.0
  %512 = vmatpush2.msra.mxu0 %v360
  %513 = vmatprep.subr.mxu0 0.0
  %514 = vmatpush2.msra.mxu0 %v359
  %515 = vmatprep.subr.mxu0 0.0
  %516 = vmatpush2.msra.mxu0 %v358
  %517 = vmatprep.subr.mxu0 0.0
  %518 = vmatpush2.msra.mxu0 %v357
  %519 = vmatprep.subr.mxu0 0.0
  %520 = vmatpush2.msra.mxu0 %v356
  %521 = vmatprep.mubr.f32.mxu0 %v295
  %522 = vmatmul.mubr.f32.gmra.mxu0 %v294
  %v523 = vpop.f32.mrf.mxu0
  %v524 = vadd.f32 %v439, %v523
  %v525 = vpop.f32.mrf.mxu0
  %526 = vmatprep.mubr.f32.mxu0 %v299
  %527 = vmatmul.mubr.f32.gmra.mxu0 %v298
  %v528 = vpop.f32.mrf.mxu0
  %v529 = vadd.f32 %v444, %v528
  %v530 = vpop.f32.mrf.mxu0
  %531 = vmatprep.mubr.f32.mxu0 %v303
  %532 = vmatmul.mubr.f32.gmra.mxu0 %v302
  %v533 = vpop.f32.mrf.mxu0
  %v534 = vadd.f32 %v449, %v533
  %v535 = vpop.f32.mrf.mxu0
  %536 = vmatprep.mubr.f32.mxu0 %v307
  %537 = vmatmul.mubr.f32.gmra.mxu0 %v306
  %v538 = vpop.f32.mrf.mxu0
  %v539 = vadd.f32 %v454, %v538
  %v540 = vpop.f32.mrf.mxu0
  %541 = vdwg.mxu0
  %v542 = vpow.f32 %v524, 0.33333334
  %v543 = vpow.f32 %v529, 0.33333334
  %v544 = vpow.f32 %v534, 0.33333334
  %v545 = vpow.f32 %v539, 0.33333334
  %v546 = vld [vmem:[%s5] sm:$0xff]
  %v547 = vld [vmem:[%s5 + $0x8] sm:$0xff]
  %v548 = vld [vmem:[%s5 + $0x10] sm:$0xff]
  %v549 = vld [vmem:[%s5 + $0x18] sm:$0xff]
  %v550 = vld [vmem:[%s6] sm:$0xff]
  %v551 = vld [vmem:[%s6 + $0x8] sm:$0xff]
  %v552 = vld [vmem:[%s6 + $0x10] sm:$0xff]
  %v553 = vld [vmem:[%s6 + $0x18] sm:$0xff]
  %555 = vset.pattern.permute.xlu0 0
  %556 = vperm.xlu0 %555, %v550
  %v557 = vpop.permute.xlu0 %556
  %560 = vset.pattern.permute.xlu0 0
  %561 = vperm.xlu0 %560, %v551
  %v562 = vpop.permute.xlu0 %561
  %565 = vset.pattern.permute.xlu0 0
  %566 = vperm.xlu0 %565, %v552
  %v567 = vpop.permute.xlu0 %566
  %570 = vset.pattern.permute.xlu0 0
  %571 = vperm.xlu0 %570, %v553
  %v572 = vpop.permute.xlu0 %571
  %vm574 = vcmask 261120
  %v576 = vsel %vm574, %v546, 0
  %v579 = vsel %vm574, %v547, 0
  %v582 = vsel %vm574, %v548, 0
  %v585 = vsel %vm574, %v549, 0
  %587 = vmatprep.subr.mxu0 0.0
  %588 = vmatpush1.msra.mxu0 0.0
  %589 = vmatprep.subr.mxu0 0.0
  %590 = vmatpush1.msra.mxu0 0.0
  %591 = vmatprep.subr.mxu0 0.0
  %592 = vmatpush1.msra.mxu0 0.0
  %593 = vmatprep.subr.mxu0 0.0
  %594 = vmatpush1.msra.mxu0 0.0
  %595 = vmatprep.subr.mxu0 0.0
  %596 = vmatpush1.msra.mxu0 0.0
  %597 = vmatprep.subr.mxu0 0.0
  %598 = vmatpush1.msra.mxu0 0.0
  %599 = vmatprep.subr.mxu0 0.0
  %600 = vmatpush1.msra.mxu0 0.0
  %601 = vmatprep.subr.mxu0 0.0
  %602 = vmatpush1.msra.mxu0 0.0
  %603 = vmatprep.subr.mxu0 0.0
  %604 = vmatpush1.msra.mxu0 0.0
  %605 = vmatprep.subr.mxu0 0.0
  %606 = vmatpush1.msra.mxu0 0.0
  %607 = vmatprep.subr.mxu0 0.0
  %608 = vmatpush1.msra.mxu0 0.0
  %609 = vmatprep.subr.mxu0 0.0
  %610 = vmatpush1.msra.mxu0 0.0
  %611 = vmatprep.subr.mxu0 0.0
  %612 = vmatpush1.msra.mxu0 %v545
  %613 = vmatprep.subr.mxu0 0.0
  %614 = vmatpush1.msra.mxu0 %v544
  %615 = vmatprep.subr.mxu0 0.0
  %616 = vmatpush1.msra.mxu0 %v543
  %617 = vmatprep.subr.mxu0 0.0
  %618 = vmatpush1.msra.mxu0 %v542
  %619 = vmatprep.subr.mxu0 0.0
  %620 = vmatpush2.msra.mxu0 0.0
  %621 = vmatprep.subr.mxu0 0.0
  %622 = vmatpush2.msra.mxu0 0.0
  %623 = vmatprep.subr.mxu0 0.0
  %624 = vmatpush2.msra.mxu0 0.0
  %625 = vmatprep.subr.mxu0 0.0
  %626 = vmatpush2.msra.mxu0 0.0
  %627 = vmatprep.subr.mxu0 0.0
  %628 = vmatpush2.msra.mxu0 0.0
  %629 = vmatprep.subr.mxu0 0.0
  %630 = vmatpush2.msra.mxu0 0.0
  %631 = vmatprep.subr.mxu0 0.0
  %632 = vmatpush2.msra.mxu0 0.0
  %633 = vmatprep.subr.mxu0 0.0
  %634 = vmatpush2.msra.mxu0 0.0
  %635 = vmatprep.subr.mxu0 0.0
  %636 = vmatpush2.msra.mxu0 0.0
  %637 = vmatprep.subr.mxu0 0.0
  %638 = vmatpush2.msra.mxu0 0.0
  %639 = vmatprep.subr.mxu0 0.0
  %640 = vmatpush2.msra.mxu0 0.0
  %641 = vmatprep.subr.mxu0 0.0
  %642 = vmatpush2.msra.mxu0 0.0
  %643 = vmatprep.subr.mxu0 0.0
  %644 = vmatpush2.msra.mxu0 0.0
  %645 = vmatprep.subr.mxu0 0.0
  %646 = vmatpush2.msra.mxu0 0.0
  %647 = vmatprep.subr.mxu0 0.0
  %648 = vmatpush2.msra.mxu0 0.0
  %649 = vmatprep.subr.mxu0 0.0
  %650 = vmatpush2.msra.mxu0 0.0
  %651 = vmatprep.mubr.f32.mxu0 0.0
  %652 = vmatmul.mubr.f32.gmra.mxu0 %v576
  %v653 = vpop.f32.mrf.mxu0
  %v654 = vadd.f32 %v557, %v653
  %v655 = vpop.f32.mrf.mxu0
  %656 = vmatprep.mubr.f32.mxu0 0.0
  %657 = vmatmul.mubr.f32.gmra.mxu0 %v579
  %v658 = vpop.f32.mrf.mxu0
  %v659 = vadd.f32 %v562, %v658
  %v660 = vpop.f32.mrf.mxu0
  %661 = vmatprep.mubr.f32.mxu0 0.0
  %662 = vmatmul.mubr.f32.gmra.mxu0 %v582
  %v663 = vpop.f32.mrf.mxu0
  %v664 = vadd.f32 %v567, %v663
  %v665 = vpop.f32.mrf.mxu0
  %666 = vmatprep.mubr.f32.mxu0 0.0
  %667 = vmatmul.mubr.f32.gmra.mxu0 %v585
  %v668 = vpop.f32.mrf.mxu0
  %v669 = vadd.f32 %v572, %v668
  %v670 = vpop.f32.mrf.mxu0
  %671 = vdwg.mxu0
  %vm672 = vcmask 15360
  %673 = vst.msk [vmem:[%s8] sm:$0xff] %vm672, %v654
  %674 = vst.msk [vmem:[%s8 + $0x8] sm:$0xff] %vm672, %v659
  %675 = vst.msk [vmem:[%s8 + $0x10] sm:$0xff] %vm672, %v664
  %676 = vst.msk [vmem:[%s8 + $0x18] sm:$0xff] %vm672, %v669
  %v677 = vmul.f32 %v654, %v654
  %v678 = vmul.f32 %v659, %v659
  %v679 = vmul.f32 %v664, %v664
  %v680 = vmul.f32 %v669, %v669
  %v681 = vsel %vm672, %v677, 0.0
  %v682 = vsel %vm672, %v678, 0.0
  %v683 = vadd.f32 %v681, %v682
  %v684 = vsel %vm672, %v679, 0.0
  %v685 = vadd.f32 %v683, %v684
  %v686 = vsel %vm672, %v680, 0.0
  %v687 = vadd.f32 %v685, %v686
  %v688 = vrot.slane %v687, 4
  %v689 = vadd.f32 %v687, %v688
  %v690 = vrot.slane %v689, 2
  %v691 = vadd.f32 %v689, %v690
  %v692 = vrot.slane %v691, 1
  %v693 = vadd.f32 %v691, %v692
  %v694 = vmax.f32 %v693, 1e-24
  %v695 = vrsqrt.pop %v694
  %v696 = vmul.f32 %v654, %v695
  %v697 = vmul.f32 %v659, %v695
  %v698 = vmul.f32 %v664, %v695
  %v699 = vmul.f32 %v669, %v695
  %v700 = vld [vmem:[%s7] sm:$0xff]
  %v701 = vld [vmem:[%s7 + $0x8] sm:$0xff]
  %v703 = vsel %vm574, %v700, 0
  %v706 = vsel %vm574, %v701, 0
  %708 = vmatprep.subr.mxu0 0.0
  %709 = vmatpush1.msra.mxu0 0.0
  %710 = vmatprep.subr.mxu0 0.0
  %711 = vmatpush1.msra.mxu0 0.0
  %712 = vmatprep.subr.mxu0 0.0
  %713 = vmatpush1.msra.mxu0 0.0
  %714 = vmatprep.subr.mxu0 0.0
  %715 = vmatpush1.msra.mxu0 0.0
  %716 = vmatprep.subr.mxu0 0.0
  %717 = vmatpush1.msra.mxu0 0.0
  %718 = vmatprep.subr.mxu0 0.0
  %719 = vmatpush1.msra.mxu0 0.0
  %720 = vmatprep.subr.mxu0 0.0
  %721 = vmatpush1.msra.mxu0 0.0
  %722 = vmatprep.subr.mxu0 0.0
  %723 = vmatpush1.msra.mxu0 0.0
  %724 = vmatprep.subr.mxu0 0.0
  %725 = vmatpush1.msra.mxu0 0.0
  %726 = vmatprep.subr.mxu0 0.0
  %727 = vmatpush1.msra.mxu0 0.0
  %728 = vmatprep.subr.mxu0 0.0
  %729 = vmatpush1.msra.mxu0 0.0
  %730 = vmatprep.subr.mxu0 0.0
  %731 = vmatpush1.msra.mxu0 0.0
  %732 = vmatprep.subr.mxu0 0.0
  %733 = vmatpush1.msra.mxu0 %v699
  %734 = vmatprep.subr.mxu0 0.0
  %735 = vmatpush1.msra.mxu0 %v698
  %736 = vmatprep.subr.mxu0 0.0
  %737 = vmatpush1.msra.mxu0 %v697
  %738 = vmatprep.subr.mxu0 0.0
  %739 = vmatpush1.msra.mxu0 %v696
  %740 = vmatprep.subr.mxu0 0.0
  %741 = vmatpush2.msra.mxu0 0.0
  %742 = vmatprep.subr.mxu0 0.0
  %743 = vmatpush2.msra.mxu0 0.0
  %744 = vmatprep.subr.mxu0 0.0
  %745 = vmatpush2.msra.mxu0 0.0
  %746 = vmatprep.subr.mxu0 0.0
  %747 = vmatpush2.msra.mxu0 0.0
  %748 = vmatprep.subr.mxu0 0.0
  %749 = vmatpush2.msra.mxu0 0.0
  %750 = vmatprep.subr.mxu0 0.0
  %751 = vmatpush2.msra.mxu0 0.0
  %752 = vmatprep.subr.mxu0 0.0
  %753 = vmatpush2.msra.mxu0 0.0
  %754 = vmatprep.subr.mxu0 0.0
  %755 = vmatpush2.msra.mxu0 0.0
  %756 = vmatprep.subr.mxu0 0.0
  %757 = vmatpush2.msra.mxu0 0.0
  %758 = vmatprep.subr.mxu0 0.0
  %759 = vmatpush2.msra.mxu0 0.0
  %760 = vmatprep.subr.mxu0 0.0
  %761 = vmatpush2.msra.mxu0 0.0
  %762 = vmatprep.subr.mxu0 0.0
  %763 = vmatpush2.msra.mxu0 0.0
  %764 = vmatprep.subr.mxu0 0.0
  %765 = vmatpush2.msra.mxu0 0.0
  %766 = vmatprep.subr.mxu0 0.0
  %767 = vmatpush2.msra.mxu0 0.0
  %768 = vmatprep.subr.mxu0 0.0
  %769 = vmatpush2.msra.mxu0 0.0
  %770 = vmatprep.subr.mxu0 0.0
  %771 = vmatpush2.msra.mxu0 0.0
  %772 = vmatprep.mubr.f32.mxu0 0.0
  %773 = vmatmul.mubr.f32.gmra.mxu0 %v703
  %v774 = vpop.f32.mrf.mxu0
  %v775 = vadd.f32 0.0, %v774
  %v776 = vpop.f32.mrf.mxu0
  %777 = vmatprep.mubr.f32.mxu0 0.0
  %778 = vmatmul.mubr.f32.gmra.mxu0 %v706
  %v779 = vpop.f32.mrf.mxu0
  %v780 = vadd.f32 0.0, %v779
  %v781 = vpop.f32.mrf.mxu0
  %782 = vdwg.mxu0
  %v783 = vmax.f32 %v775, %v780
  %v784 = vmax.f32 %v783, -1.0
  %v785 = vmin.f32 %v784, 1.0
  %786 = vst.msk [vmem:[%s9] sm:$0xff] %vm672, %v785
  // Predicated region
  $region34: #{inner_net_forward.1} parent=0 // pred_check
    _
  $region35: #{inner_net_forward.1} parent=0 // pred_check_branch
    %788 = sbr.rel (0) target = $region37
  $region36: #{inner_net_forward.1} parent=0 // pred_region
    _
  $region37: #{inner_net_forward.1} parent=0 // pred_fallthru
    _
  // Predicated region
  $region38: #{inner_net_forward.1} parent=0 // pred_check
    _
  $region39: #{inner_net_forward.1} parent=0 // pred_check_branch
    %790 = sbr.rel (0) target = $region41
  $region40: #{inner_net_forward.1} parent=0 // pred_region
    _
  $region41: #{inner_net_forward.1} parent=0 // pred_fallthru
    _
  // Predicated region
  $region42: #{inner_net_forward.1} parent=0 // pred_check
    _
  $region43: #{inner_net_forward.1} parent=0 // pred_check_branch
    %792 = sbr.rel (0) target = $region45
  $region44: #{inner_net_forward.1} parent=0 // pred_region
    _
  $region45: #{inner_net_forward.1} parent=0 // pred_fallthru
    _
  // Predicated region
  $region46: #{inner_net_forward.1} parent=0 // pred_check
    _
  $region47: #{inner_net_forward.1} parent=0 // pred_check_branch
    %794 = sbr.rel (0) target = $region49
  $region48: #{inner_net_forward.1} parent=0 // pred_region
    _
  $region49: #{inner_net_forward.1} parent=0 // pred_fallthru
    _

</llo_original>
